<compile_context>
chip_gen: v6e
topology: v6e:2x2x1
jax: 0.10.0
libtpu: 0.0.40
codegen_flags: <defaults>
</compile_context>

<pallas_src>
import jax
import jax.numpy as jnp
import numpy as np
from jax.experimental import pallas as pl
from jax.experimental.pallas import tpu as pltpu


def spatial_gate_kernel(b_ref, a_ref, rmax_ref, rsum_ref, x_ref, o_ref):
    # b_ref    : SMEM f32[1]          conv bias
    # a_ref    : VMEM f32[3, H, H]    H-shift matrices for dh = -1, 0, +1
    # rmax_ref : VMEM f32[3, W, W]    banded W-shift matrices (max-branch taps)
    # rsum_ref : VMEM f32[3, W, W]    banded W-shift matrices (mean taps / C)
    # x_ref    : VMEM (C, H, W)       one batch element
    # o_ref    : VMEM (C, W)          output: sum over H of gated input
    C, H, W = x_ref.shape
    f32 = jnp.float32

    # ---- channel pool: vectorized max / sum over the leading (channel) axis.
    xf = x_ref[...].astype(f32)                  # (C, H, W), f32 accumulation
    cmax = jnp.max(xf, axis=0)                   # (H, W)
    csum = jnp.sum(xf, axis=0)                   # (H, W); 1/C folded into taps

    # ---- 3x3 conv (2 -> 1, padding=1) on the MXU:
    #      conv = bias + sum_dh  A_dh @ (cmax @ Rmax_dh + csum @ Rsum_dh)
    conv = jnp.full((H, W), b_ref[0], dtype=f32)
    for t in range(3):                           # t -> dh = t - 1
        tmp = (jnp.dot(cmax, rmax_ref[t], preferred_element_type=f32)
               + jnp.dot(csum, rsum_ref[t], preferred_element_type=f32))
        conv = conv + jnp.dot(a_ref[t], tmp, preferred_element_type=f32)
    scale = jax.nn.sigmoid(conv)                 # (H, W)

    # ---- gate every channel and reduce over H (sublanes) in one shot.
    gated_sum = jnp.sum(xf * scale[None, :, :], axis=1)     # (C, W)
    o_ref[...] = gated_sum.astype(o_ref.dtype)


def _shift_matrix(n, d):
    """S[i, j] = 1 iff j == i + d, so (S @ M)[i] = M[i + d] with zero padding."""
    idx = jnp.arange(n)
    return (idx[None, :] == idx[:, None] + d).astype(jnp.float32)


def _round_up(x, m):
    return (x + m - 1) // m * m


def spatial_gate(x, conv_w, conv_b):
    """x: (B, C, H, W); conv_w: (1, 2, 3, 3); conv_b: (1,). Returns (B, C, W)."""
    B, C, H, W = x.shape

    w = conv_w.astype(jnp.float32).reshape(2, 3, 3)
    kmax = w[0]
    ksum = w[1] / C                  # fold 1/C: kernel uses channel SUM, not mean

    # Host-precomputed shift / banded-tap matrices for the MXU-based 3x3 conv.
    a_shift = jnp.stack([_shift_matrix(H, dh) for dh in (-1, 0, 1)])      # (3, H, H)

    def band(taps):                  # taps: (3,) for dw = -1, 0, +1
        return sum(taps[dw + 1] * _shift_matrix(W, -dw) for dw in (-1, 0, 1))

    rmax = jnp.stack([band(kmax[dh + 1]) for dh in (-1, 0, 1)])           # (3, W, W)
    rsum = jnp.stack([band(ksum[dh + 1]) for dh in (-1, 0, 1)])           # (3, W, W)

    b_flat = conv_b.reshape(-1).astype(jnp.float32)                       # (1,)

    # Explicit VMEM budget from (8,128)-tile-padded footprints.
    itemsize = jnp.dtype(x.dtype).itemsize
    Hp, Wp = _round_up(H, 8), _round_up(W, 128)
    x_blk = C * Hp * Wp * itemsize                    # input block
    out_blk = C * 8 * Wp * itemsize                   # output block ((C, W) tile)
    mats = (3 * _round_up(H, 8) * _round_up(H, 128) + 6 * _round_up(W, 8) * Wp) * 4
    temps = 2 * C * Hp * Wp * 4 + 8 * Hp * Wp * 4     # f32 copy / product + slabs
    need = 2 * (x_blk + out_blk + mats) + temps       # double-buffered I/O + weights
    vmem_bytes = int(min(max(need + (2 << 20), 16 << 20), 64 << 20))

    return pl.pallas_call(
        spatial_gate_kernel,
        out_shape=jax.ShapeDtypeStruct((B, C, W), x.dtype),
        grid=(B,),
        in_specs=[
            pl.BlockSpec(memory_space=pltpu.MemorySpace.SMEM),        # bias
            pl.BlockSpec((3, H, H), lambda b: (0, 0, 0)),             # H-shift mats
            pl.BlockSpec((3, W, W), lambda b: (0, 0, 0)),             # W-band mats (max)
            pl.BlockSpec((3, W, W), lambda b: (0, 0, 0)),             # W-band mats (sum)
            pl.BlockSpec((None, C, H, W), lambda b: (b, 0, 0, 0)),    # x[b]
        ],
        out_specs=pl.BlockSpec((None, C, W), lambda b: (b, 0, 0)),
        compiler_params=pltpu.CompilerParams(
            dimension_semantics=("parallel",),
            vmem_limit_bytes=vmem_bytes,
        ),
    )(b_flat, a_shift, rmax, rsum, x)


def spatial_gate_reference(x, conv_w, conv_b):
    """Pure-JAX reference matching the PyTorch module exactly."""
    cmax = jnp.max(x, axis=1, keepdims=True)
    cmean = jnp.mean(x, axis=1, keepdims=True)
    comp = jnp.concatenate([cmax, cmean], axis=1)                # (B, 2, H, W)
    conv = jax.lax.conv_general_dilated(
        comp, conv_w, window_strides=(1, 1), padding=((1, 1), (1, 1)),
        dimension_numbers=("NCHW", "OIHW", "NCHW"),
        precision=jax.lax.Precision.HIGHEST)
    conv = conv + conv_b[None, :, None, None]                    # (B, 1, H, W)
    scale = jax.nn.sigmoid(conv)
    return jnp.sum(x * scale, axis=2)                            # (B, C, W)


if __name__ == "__main__":
    B, C, H, W = 2, 4, 16, 16
    key = jax.random.PRNGKey(0)
    kx, kw, kb = jax.random.split(key, 3)

    x = jax.random.normal(kx, (B, C, H, W), dtype=jnp.float32)
    # Deterministic synthetic Conv2d(2, 1, 3, padding=1) params (no checkpoint).
    conv_w = jax.random.normal(kw, (1, 2, 3, 3), dtype=jnp.float32) * 0.2
    conv_b = jax.random.normal(kb, (1,), dtype=jnp.float32) * 0.1

    out = jax.block_until_ready(spatial_gate(x, conv_w, conv_b))
    ref = jax.block_until_ready(spatial_gate_reference(x, conv_w, conv_b))
    np.testing.assert_allclose(np.asarray(out), np.asarray(ref),
                               rtol=1e-4, atol=1e-4)

    print("KERNEL_OK")
</pallas_src>

<mosaic_0001>
module attributes {stable_mosaic.version = 11 : i64} {
  func.func @spatial_gate_kernel(%arg0: i32, %arg1: memref<1xf32, #tpu.memory_space<smem>>, %arg2: memref<3x16x16xf32, #tpu.memory_space<vmem>>, %arg3: memref<3x16x16xf32, #tpu.memory_space<vmem>>, %arg4: memref<3x16x16xf32, #tpu.memory_space<vmem>>, %arg5: memref<1x4x16x16xf32, #tpu.memory_space<vmem>>, %arg6: memref<1x4x16xf32, #tpu.memory_space<vmem>>) attributes {dimension_semantics = [#tpu.dimension_semantics<parallel>], iteration_bounds = array<i64: 2>, scalar_prefetch = 0 : i64, scratch_operands = 0 : i64, tpu.core_type = #tpu.core_type<tc>, window_params = [{transform_indices = @transform_0, window_bounds = array<i64: 1>}, {pipeline_mode = #tpu.pipeline_mode<synchronous>, transform_indices = @transform_1, window_bounds = array<i64: 3, 16, 16>}, {pipeline_mode = #tpu.pipeline_mode<synchronous>, transform_indices = @transform_2, window_bounds = array<i64: 3, 16, 16>}, {pipeline_mode = #tpu.pipeline_mode<synchronous>, transform_indices = @transform_3, window_bounds = array<i64: 3, 16, 16>}, {transform_indices = @transform_4, window_bounds = array<i64: 1, 4, 16, 16>}, {transform_indices = @transform_5, window_bounds = array<i64: 1, 4, 16>}]} {
    %c0 = arith.constant 0 : index
    %c0_0 = arith.constant 0 : index
    %c0_1 = arith.constant 0 : index
    %c0_2 = arith.constant 0 : index
    %0 = vector.load %arg5[%c0, %c0_0, %c0_1, %c0_2] : memref<1x4x16x16xf32, #tpu.memory_space<vmem>>, vector<1x4x16x16xf32>
    %1 = vector.shape_cast %0 : vector<1x4x16x16xf32> to vector<4x16x16xf32>
    %cst = arith.constant dense<0xFF800000> : vector<16x16xf32>
    %2 = vector.multi_reduction <maximumf>, %1, %cst [0] : vector<4x16x16xf32> to vector<16x16xf32>
    %cst_3 = arith.constant dense<0.000000e+00> : vector<16x16xf32>
    %3 = vector.multi_reduction <add>, %1, %cst_3 [0] : vector<4x16x16xf32> to vector<16x16xf32>
    %c0_4 = arith.constant 0 : index
    %4 = memref.load %arg1[%c0_4] : memref<1xf32, #tpu.memory_space<smem>>
    %5 = vector.broadcast %4 : f32 to vector<16x16xf32>
    %c0_5 = arith.constant 0 : index
    %c0_6 = arith.constant 0 : index
    %c0_7 = arith.constant 0 : index
    %6 = vector.load %arg3[%c0_5, %c0_6, %c0_7] : memref<3x16x16xf32, #tpu.memory_space<vmem>>, vector<1x16x16xf32>
    %7 = vector.shape_cast %6 : vector<1x16x16xf32> to vector<16x16xf32>
    %cst_8 = arith.constant dense<0.000000e+00> : vector<16x16xf32>
    %8 = tpu.matmul %2, %7, %cst_8 {dimension_numbers = #tpu.dot_dimension_numbers<[1], [0], [0], [1], [0, 0, 1, 1], [], []>} : vector<16x16xf32>, vector<16x16xf32>, vector<16x16xf32> -> vector<16x16xf32>
    %c0_9 = arith.constant 0 : index
    %c0_10 = arith.constant 0 : index
    %c0_11 = arith.constant 0 : index
    %9 = vector.load %arg4[%c0_9, %c0_10, %c0_11] : memref<3x16x16xf32, #tpu.memory_space<vmem>>, vector<1x16x16xf32>
    %10 = vector.shape_cast %9 : vector<1x16x16xf32> to vector<16x16xf32>
    %cst_12 = arith.constant dense<0.000000e+00> : vector<16x16xf32>
    %11 = tpu.matmul %3, %10, %cst_12 {dimension_numbers = #tpu.dot_dimension_numbers<[1], [0], [0], [1], [0, 0, 1, 1], [], []>} : vector<16x16xf32>, vector<16x16xf32>, vector<16x16xf32> -> vector<16x16xf32>
    %12 = arith.addf %8, %11 : vector<16x16xf32>
    %c0_13 = arith.constant 0 : index
    %c0_14 = arith.constant 0 : index
    %c0_15 = arith.constant 0 : index
    %13 = vector.load %arg2[%c0_13, %c0_14, %c0_15] : memref<3x16x16xf32, #tpu.memory_space<vmem>>, vector<1x16x16xf32>
    %14 = vector.shape_cast %13 : vector<1x16x16xf32> to vector<16x16xf32>
    %cst_16 = arith.constant dense<0.000000e+00> : vector<16x16xf32>
    %15 = tpu.matmul %14, %12, %cst_16 {dimension_numbers = #tpu.dot_dimension_numbers<[1], [0], [0], [1], [0, 0, 1, 1], [], []>} : vector<16x16xf32>, vector<16x16xf32>, vector<16x16xf32> -> vector<16x16xf32>
    %16 = arith.addf %5, %15 : vector<16x16xf32>
    %c1 = arith.constant 1 : index
    %c0_17 = arith.constant 0 : index
    %c0_18 = arith.constant 0 : index
    %17 = vector.load %arg3[%c1, %c0_17, %c0_18] : memref<3x16x16xf32, #tpu.memory_space<vmem>>, vector<1x16x16xf32>
    %18 = vector.shape_cast %17 : vector<1x16x16xf32> to vector<16x16xf32>
    %cst_19 = arith.constant dense<0.000000e+00> : vector<16x16xf32>
    %19 = tpu.matmul %2, %18, %cst_19 {dimension_numbers = #tpu.dot_dimension_numbers<[1], [0], [0], [1], [0, 0, 1, 1], [], []>} : vector<16x16xf32>, vector<16x16xf32>, vector<16x16xf32> -> vector<16x16xf32>
    %c1_20 = arith.constant 1 : index
    %c0_21 = arith.constant 0 : index
    %c0_22 = arith.constant 0 : index
    %20 = vector.load %arg4[%c1_20, %c0_21, %c0_22] : memref<3x16x16xf32, #tpu.memory_space<vmem>>, vector<1x16x16xf32>
    %21 = vector.shape_cast %20 : vector<1x16x16xf32> to vector<16x16xf32>
    %cst_23 = arith.constant dense<0.000000e+00> : vector<16x16xf32>
    %22 = tpu.matmul %3, %21, %cst_23 {dimension_numbers = #tpu.dot_dimension_numbers<[1], [0], [0], [1], [0, 0, 1, 1], [], []>} : vector<16x16xf32>, vector<16x16xf32>, vector<16x16xf32> -> vector<16x16xf32>
    %23 = arith.addf %19, %22 : vector<16x16xf32>
    %c1_24 = arith.constant 1 : index
    %c0_25 = arith.constant 0 : index
    %c0_26 = arith.constant 0 : index
    %24 = vector.load %arg2[%c1_24, %c0_25, %c0_26] : memref<3x16x16xf32, #tpu.memory_space<vmem>>, vector<1x16x16xf32>
    %25 = vector.shape_cast %24 : vector<1x16x16xf32> to vector<16x16xf32>
    %cst_27 = arith.constant dense<0.000000e+00> : vector<16x16xf32>
    %26 = tpu.matmul %25, %23, %cst_27 {dimension_numbers = #tpu.dot_dimension_numbers<[1], [0], [0], [1], [0, 0, 1, 1], [], []>} : vector<16x16xf32>, vector<16x16xf32>, vector<16x16xf32> -> vector<16x16xf32>
    %27 = arith.addf %16, %26 : vector<16x16xf32>
    %c2 = arith.constant 2 : index
    %c0_28 = arith.constant 0 : index
    %c0_29 = arith.constant 0 : index
    %28 = vector.load %arg3[%c2, %c0_28, %c0_29] : memref<3x16x16xf32, #tpu.memory_space<vmem>>, vector<1x16x16xf32>
    %29 = vector.shape_cast %28 : vector<1x16x16xf32> to vector<16x16xf32>
    %cst_30 = arith.constant dense<0.000000e+00> : vector<16x16xf32>
    %30 = tpu.matmul %2, %29, %cst_30 {dimension_numbers = #tpu.dot_dimension_numbers<[1], [0], [0], [1], [0, 0, 1, 1], [], []>} : vector<16x16xf32>, vector<16x16xf32>, vector<16x16xf32> -> vector<16x16xf32>
    %c2_31 = arith.constant 2 : index
    %c0_32 = arith.constant 0 : index
    %c0_33 = arith.constant 0 : index
    %31 = vector.load %arg4[%c2_31, %c0_32, %c0_33] : memref<3x16x16xf32, #tpu.memory_space<vmem>>, vector<1x16x16xf32>
    %32 = vector.shape_cast %31 : vector<1x16x16xf32> to vector<16x16xf32>
    %cst_34 = arith.constant dense<0.000000e+00> : vector<16x16xf32>
    %33 = tpu.matmul %3, %32, %cst_34 {dimension_numbers = #tpu.dot_dimension_numbers<[1], [0], [0], [1], [0, 0, 1, 1], [], []>} : vector<16x16xf32>, vector<16x16xf32>, vector<16x16xf32> -> vector<16x16xf32>
    %34 = arith.addf %30, %33 : vector<16x16xf32>
    %c2_35 = arith.constant 2 : index
    %c0_36 = arith.constant 0 : index
    %c0_37 = arith.constant 0 : index
    %35 = vector.load %arg2[%c2_35, %c0_36, %c0_37] : memref<3x16x16xf32, #tpu.memory_space<vmem>>, vector<1x16x16xf32>
    %36 = vector.shape_cast %35 : vector<1x16x16xf32> to vector<16x16xf32>
    %cst_38 = arith.constant dense<0.000000e+00> : vector<16x16xf32>
    %37 = tpu.matmul %36, %34, %cst_38 {dimension_numbers = #tpu.dot_dimension_numbers<[1], [0], [0], [1], [0, 0, 1, 1], [], []>} : vector<16x16xf32>, vector<16x16xf32>, vector<16x16xf32> -> vector<16x16xf32>
    %38 = arith.addf %27, %37 : vector<16x16xf32>
    %39 = arith.negf %38 : vector<16x16xf32>
    %40 = math.exp %39 : vector<16x16xf32>
    %cst_39 = arith.constant 1.000000e+00 : f32
    %41 = vector.broadcast %cst_39 : f32 to vector<16x16xf32>
    %42 = arith.addf %41, %40 : vector<16x16xf32>
    %43 = arith.divf %41, %42 : vector<16x16xf32>
    %44 = vector.shape_cast %43 : vector<16x16xf32> to vector<1x16x16xf32>
    %45 = vector.broadcast %44 : vector<1x16x16xf32> to vector<4x16x16xf32>
    %46 = arith.mulf %1, %45 : vector<4x16x16xf32>
    %cst_40 = arith.constant dense<0.000000e+00> : vector<4x16xf32>
    %47 = vector.multi_reduction <add>, %46, %cst_40 [1] : vector<4x16x16xf32> to vector<4x16xf32>
    %c0_41 = arith.constant 0 : index
    %c0_42 = arith.constant 0 : index
    %c0_43 = arith.constant 0 : index
    %48 = vector.load %arg6[%c0_41, %c0_42, %c0_43] : memref<1x4x16xf32, #tpu.memory_space<vmem>>, vector<1x4x16xf32>
    %49 = vector.shape_cast %48 : vector<1x4x16xf32> to vector<4x16xf32>
    %50 = vector.shape_cast %47 : vector<4x16xf32> to vector<1x4x16xf32>
    tpu.vector_store %arg6[%c0_41, %c0_42, %c0_43], %50 {strides = array<i32>} : memref<1x4x16xf32, #tpu.memory_space<vmem>>, vector<1x4x16xf32>,
    return
  }
  func.func @transform_0(%arg0: i32) -> i32 {
    %c0_i32 = arith.constant 0 : i32
    %c0_i32_0 = arith.constant 0 : i32
    return %c0_i32 : i32
  }
  func.func @transform_1(%arg0: i32) -> (i32, i32, i32) {
    %c0_i32 = arith.constant 0 : i32
    %c0_i32_0 = arith.constant 0 : i32
    %c0_i32_1 = arith.constant 0 : i32
    %c0_i32_2 = arith.constant 0 : i32
    return %c0_i32, %c0_i32_0, %c0_i32_1 : i32, i32, i32
  }
  func.func @transform_2(%arg0: i32) -> (i32, i32, i32) {
    %c0_i32 = arith.constant 0 : i32
    %c0_i32_0 = arith.constant 0 : i32
    %c0_i32_1 = arith.constant 0 : i32
    %c0_i32_2 = arith.constant 0 : i32
    return %c0_i32, %c0_i32_0, %c0_i32_1 : i32, i32, i32
  }
  func.func @transform_3(%arg0: i32) -> (i32, i32, i32) {
    %c0_i32 = arith.constant 0 : i32
    %c0_i32_0 = arith.constant 0 : i32
    %c0_i32_1 = arith.constant 0 : i32
    %c0_i32_2 = arith.constant 0 : i32
    return %c0_i32, %c0_i32_0, %c0_i32_1 : i32, i32, i32
  }
  func.func @transform_4(%arg0: i32) -> (i32, i32, i32, i32) {
    %c0_i32 = arith.constant 0 : i32
    %c0_i32_0 = arith.constant 0 : i32
    %c0_i32_1 = arith.constant 0 : i32
    %c0_i32_2 = arith.constant 0 : i32
    return %arg0, %c0_i32, %c0_i32_0, %c0_i32_1 : i32, i32, i32, i32
  }
  func.func @transform_5(%arg0: i32) -> (i32, i32, i32) {
    %c0_i32 = arith.constant 0 : i32
    %c0_i32_0 = arith.constant 0 : i32
    %c0_i32_1 = arith.constant 0 : i32
    return %arg0, %c0_i32, %c0_i32_0 : i32, i32, i32
  }
}

</mosaic_0001>

<llo_original>
// kernel: tpu_custom_call.1
$region0: #{tpu_custom_call.1}
  #allocation0 [shape = 'u32[]', space=smem, size = 0x4, offset = 0x4, fixed_abs, tag = 'smem constant byte address 0x4 - core index']
  #allocation1 [shape = 'u32[144,128]{1,0:T(1,128)}', space=vmem, size = 0x12000, scoped, tag = 'internal scratch']
  #allocation2 [shape = 'f32[1]{0:T(128)S(6)}', space=smem, size = 0x200, scoped, tag = 'scoped memory for tpu_custom_call.1']
  %s0 = inlined_call_operand.<no memory space> [shape: f32[1], index: 0, kind: input, shape index: {}]
  %s1 = inlined_call_operand.hbm [shape: f32[3,16,16], index: 1, kind: input, shape index: {}]
  %s2 = inlined_call_operand.hbm [shape: f32[3,16,16], index: 2, kind: input, shape index: {}]
  %s3 = inlined_call_operand.hbm [shape: f32[3,16,16], index: 3, kind: input, shape index: {}]
  %s4 = inlined_call_operand.hbm [shape: f32[2,4,16,16], index: 4, kind: input, shape index: {}]
  %s5 = inlined_call_operand.hbm [shape: f32[2,4,16], index: 5, kind: output, shape index: {}]
  %s6 = sld [smem:[#allocation0]]
  $region69: #{tpu_custom_call.1} parent=0
    _
  %s8 = ssub.s32 1, %s6
  %s9 = scalar_select 0, %s8, %s6
  %10 = sst [smem:[#allocation2]] %s0
  $region1: #{tpu_custom_call.1} parent=0
    #allocation3 [shape = 'u8[24576]{0}', space=vmem, size = 0x6000, scoped, tag = 'input window, operand 1, single buffered']
    #allocation4 [shape = 's32[2]{0}', space=sflag, size = 0x8, scoped, tag = 'scoped memory for tpu_custom_call.1']
    #allocation5 [shape = 's32[2]{0}', space=sflag, size = 0x8, scoped, tag = 'scoped memory for tpu_custom_call.1']
    #allocation6 [shape = 'u8[24576]{0}', space=vmem, size = 0x6000, scoped, tag = 'input window, operand 2, single buffered']
    #allocation7 [shape = 's32[1]{0}', space=sflag, size = 0x4, scoped, tag = 'scoped memory for tpu_custom_call.1']
    #allocation8 [shape = 'u8[24576]{0}', space=vmem, size = 0x6000, scoped, tag = 'input window, operand 3, single buffered']
    #allocation9 [shape = 'u8[65536]{0}', space=vmem, size = 0x10000, scoped, tag = 'input window, operand 4']
    #allocation10 [shape = 's32[2]{0}', space=sflag, size = 0x8, scoped, tag = 'scoped memory for tpu_custom_call.1']
    #allocation11 [shape = 'u8[4096]{0}', space=vmem, size = 0x1000, scoped, tag = 'output window, operand 0']
    %11 = vsyncpa [#allocation4], 0
    %12 = vsyncpa [#allocation7], 0
    %13 = vsyncpa [#allocation10], 0
    %s14 = scalar_lea.sflag [#allocation10], 1
    %15 = vsyncpa %s14, 0
    %16 = vsyncpa [#allocation5], 0
    %s17 = scalar_lea.sflag [#allocation5], 1
    %18 = vsyncpa %s17, 0
    loop: start=0, step=1, limit=4
    $region2: #{tpu_custom_call.1} parent=1 // loop_pre_header
      _
    $region3: #{tpu_custom_call.1} parent=1 // loop_header
      %s20 = sphi 0, %s24
      %p21 = scmp.ge.s32.totalorder %s20, 4
      %s28 = sphi 0, %s28
      %s30 = sphi 0, %s28
      %s31 = sphi 0, %s30
      %s45 = sphi 0, %s31
      %s49 = sphi 0, %s49
      %s51 = sphi 0, %s49
      %s52 = sphi 0, %s51
      %s66 = sphi 0, %s52
      %s70 = sphi 0, %s70
      %s72 = sphi 0, %s70
      %s73 = sphi 0, %s72
      %s87 = sphi 0, %s73
      %s91 = sphi 0, %s91
      %s93 = sphi 0, %s91
      %s94 = sphi 0, %s93
      %s108 = sphi 0, %s94
      %s114 = sphi 0, %s116
      %s117 = sphi 0, %s114
      %s118 = sphi 0, %s117
      %s134 = sphi 0, %s118
      %s140 = sphi 0, %s142
      %s143 = sphi 0, %s140
      %s144 = sphi 0, %s143
      %s160 = sphi 0, %s144
    $region4: #{tpu_custom_call.1} parent=1 // loop_header_branch
      %23 = sbr.rel (%p21) target = $region8
    $region5: #{tpu_custom_call.1} parent=1 // loop_body
      %s25 = ssub.s32 %s20, 1
      %s26 = ssub.s32 %s20, 2
      %s27 = sadd.s32 %s20, 1
      %s29 = sadd.s32 %s28, 1
      %p32 = scmp.eq.s32.totalorder %s20, 1
      %p33 = scmp.ne.s32.totalorder %s28, %s30
      %p34 = scmp.eq.s32.totalorder %s20, 0
      %p35 = por %p33, %p34
      %p36 = scmp.ne.s32.totalorder %s28, %s30
      %p37 = scmp.eq.s32.totalorder %s25, 1
      %p38 = por %p36, %p37
      %p39 = scmp.ne.s32.totalorder %s30, %s31
      %p40 = scmp.eq.s32.totalorder %s25, 0
      %p41 = por %p39, %p40
      %p42 = scmp.ne.s32.totalorder %s30, %s31
      %p43 = scmp.eq.s32.totalorder %s26, 1
      %p44 = por %p42, %p43
      %p46 = scmp.ne.s32.totalorder %s31, %s45
      %p47 = scmp.eq.s32.totalorder %s26, 0
      %p48 = por %p46, %p47
      %s50 = sadd.s32 %s49, 1
      %p53 = scmp.eq.s32.totalorder %s20, 1
      %p54 = scmp.ne.s32.totalorder %s49, %s51
      %p55 = scmp.eq.s32.totalorder %s20, 0
      %p56 = por %p54, %p55
      %p57 = scmp.ne.s32.totalorder %s49, %s51
      %p58 = scmp.eq.s32.totalorder %s25, 1
      %p59 = por %p57, %p58
      %p60 = scmp.ne.s32.totalorder %s51, %s52
      %p61 = scmp.eq.s32.totalorder %s25, 0
      %p62 = por %p60, %p61
      %p63 = scmp.ne.s32.totalorder %s51, %s52
      %p64 = scmp.eq.s32.totalorder %s26, 1
      %p65 = por %p63, %p64
      %p67 = scmp.ne.s32.totalorder %s52, %s66
      %p68 = scmp.eq.s32.totalorder %s26, 0
      %p69 = por %p67, %p68
      %s71 = sadd.s32 %s70, 1
      %p74 = scmp.eq.s32.totalorder %s20, 1
      %p75 = scmp.ne.s32.totalorder %s70, %s72
      %p76 = scmp.eq.s32.totalorder %s20, 0
      %p77 = por %p75, %p76
      %p78 = scmp.ne.s32.totalorder %s70, %s72
      %p79 = scmp.eq.s32.totalorder %s25, 1
      %p80 = por %p78, %p79
      %p81 = scmp.ne.s32.totalorder %s72, %s73
      %p82 = scmp.eq.s32.totalorder %s25, 0
      %p83 = por %p81, %p82
      %p84 = scmp.ne.s32.totalorder %s72, %s73
      %p85 = scmp.eq.s32.totalorder %s26, 1
      %p86 = por %p84, %p85
      %p88 = scmp.ne.s32.totalorder %s73, %s87
      %p89 = scmp.eq.s32.totalorder %s26, 0
      %p90 = por %p88, %p89
      %s92 = sadd.s32 %s91, 1
      %p95 = scmp.eq.s32.totalorder %s20, 1
      %p96 = scmp.ne.s32.totalorder %s91, %s93
      %p97 = scmp.eq.s32.totalorder %s20, 0
      %p98 = por %p96, %p97
      %p99 = scmp.ne.s32.totalorder %s91, %s93
      %p100 = scmp.eq.s32.totalorder %s25, 1
      %p101 = por %p99, %p100
      %p102 = scmp.ne.s32.totalorder %s93, %s94
      %p103 = scmp.eq.s32.totalorder %s25, 0
      %p104 = por %p102, %p103
      %p105 = scmp.ne.s32.totalorder %s93, %s94
      %p106 = scmp.eq.s32.totalorder %s26, 1
      %p107 = por %p105, %p106
      %p109 = scmp.ne.s32.totalorder %s94, %s108
      %p110 = scmp.eq.s32.totalorder %s26, 0
      %p111 = por %p109, %p110
      %s112 = ssub.s32 %s20, %s27
      %p113 = scmp.eq.s32.totalorder %s112, 0
      %s115 = sadd.s32 %s114, 1
      %s116 = scalar_select %p113, %s114, %s115
      %p119 = pneg %p113
      %p120 = scmp.eq.s32.totalorder %s20, 1
      %p121 = por %p119, %p120
      %p122 = scmp.ne.s32.totalorder %s114, %s117
      %p123 = scmp.eq.s32.totalorder %s20, 0
      %p124 = por %p122, %p123
      %p125 = scmp.ne.s32.totalorder %s114, %s117
      %p126 = scmp.eq.s32.totalorder %s25, 1
      %p127 = por %p125, %p126
      %p128 = scmp.ne.s32.totalorder %s117, %s118
      %p129 = scmp.eq.s32.totalorder %s25, 0
      %p130 = por %p128, %p129
      %p131 = scmp.ne.s32.totalorder %s117, %s118
      %p132 = scmp.eq.s32.totalorder %s26, 1
      %p133 = por %p131, %p132
      %p135 = scmp.ne.s32.totalorder %s118, %s134
      %p136 = scmp.eq.s32.totalorder %s26, 0
      %p137 = por %p135, %p136
      %s138 = ssub.s32 %s20, %s27
      %p139 = scmp.eq.s32.totalorder %s138, 0
      %s141 = sadd.s32 %s140, 1
      %s142 = scalar_select %p139, %s140, %s141
      %p145 = pneg %p139
      %p146 = scmp.eq.s32.totalorder %s20, 1
      %p147 = por %p145, %p146
      %p148 = scmp.ne.s32.totalorder %s140, %s143
      %p149 = scmp.eq.s32.totalorder %s20, 0
      %p150 = por %p148, %p149
      %p151 = scmp.ne.s32.totalorder %s140, %s143
      %p152 = scmp.eq.s32.totalorder %s25, 1
      %p153 = por %p151, %p152
      %p154 = scmp.ne.s32.totalorder %s143, %s144
      %p155 = scmp.eq.s32.totalorder %s25, 0
      %p156 = por %p154, %p155
      %p157 = scmp.ne.s32.totalorder %s143, %s144
      %p158 = scmp.eq.s32.totalorder %s26, 1
      %p159 = por %p157, %p158
      %p161 = scmp.ne.s32.totalorder %s144, %s160
      %p162 = scmp.eq.s32.totalorder %s26, 0
      %p163 = por %p161, %p162
      %p164 = scmp.le.s32.totalorder 1, %s20
      %p165 = scmp.lt.s32.totalorder %s20, 3
      %p166 = pnand %p164, %p165
      %p167 = pneg %p166
      // Predicated region
      $region9: #{tpu_custom_call.1} parent=5 // pred_check
        _
      $region10: #{tpu_custom_call.1} parent=5 // pred_check_branch
        %169 = sbr.rel (%p166) target = $region12
      $region11: #{tpu_custom_call.1} parent=5 // pred_region
        %s170 = ssub.s32 %s20, 1
        // Predicated region
        $region13: #{tpu_custom_call.1} parent=11 // pred_check
          %p171 = pneg %p41
        $region14: #{tpu_custom_call.1} parent=11 // pred_check_branch
          %173 = sbr.rel (%p171) target = $region16
        $region15: #{tpu_custom_call.1} parent=11 // pred_region
          _
        $region16: #{tpu_custom_call.1} parent=11 // pred_fallthru
          _
        // Predicated region
        $region17: #{tpu_custom_call.1} parent=11 // pred_check
          %p174 = pneg %p62
        $region18: #{tpu_custom_call.1} parent=11 // pred_check_branch
          %176 = sbr.rel (%p174) target = $region20
        $region19: #{tpu_custom_call.1} parent=11 // pred_region
          %s178 = ssub.s32 768, 768
          %179 = vsyncadd [#allocation4], %s178
          %s180 = sshll.u32 [#allocation3], 4
          %s181 = int_to_ptr.vmem [resolvable:$true] %s180
          %186 = dma.hbm_to_vmem [thread:$0]  %s1, 768, %s181, [#allocation4], 128, 128, 8
        $region20: #{tpu_custom_call.1} parent=11 // pred_fallthru
          _
        // Predicated region
        $region21: #{tpu_custom_call.1} parent=11 // pred_check
          %p187 = pneg %p83
        $region22: #{tpu_custom_call.1} parent=11 // pred_check_branch
          %189 = sbr.rel (%p187) target = $region24
        $region23: #{tpu_custom_call.1} parent=11 // pred_region
          %s191 = ssub.s32 768, 768
          %192 = vsyncadd [#allocation7], %s191
          %s193 = sshll.u32 [#allocation6], 4
          %s194 = int_to_ptr.vmem [resolvable:$true] %s193
          %199 = dma.hbm_to_vmem [thread:$0]  %s2, 768, %s194, [#allocation7], 128, 128, 8
        $region24: #{tpu_custom_call.1} parent=11 // pred_fallthru
          _
        // Predicated region
        $region25: #{tpu_custom_call.1} parent=11 // pred_check
          %p200 = pneg %p104
        $region26: #{tpu_custom_call.1} parent=11 // pred_check_branch
          %202 = sbr.rel (%p200) target = $region28
        $region27: #{tpu_custom_call.1} parent=11 // pred_region
          %s204 = ssub.s32 768, 768
          %205 = vsyncadd [#allocation7], %s204
          %s206 = sshll.u32 [#allocation8], 4
          %s207 = int_to_ptr.vmem [resolvable:$true] %s206
          %212 = dma.hbm_to_vmem [thread:$0]  %s3, 768, %s207, [#allocation7], 128, 128, 8
        $region28: #{tpu_custom_call.1} parent=11 // pred_fallthru
          _
      $region12: #{tpu_custom_call.1} parent=5 // pred_fallthru
        _
      %p213 = scmp.lt.s32.totalorder %s20, 2
      // Predicated region
      $region29: #{tpu_custom_call.1} parent=5 // pred_check
        %p214 = pneg %p213
      $region30: #{tpu_custom_call.1} parent=5 // pred_check_branch
        %216 = sbr.rel (%p214) target = $region32
      $region31: #{tpu_custom_call.1} parent=5 // pred_region
        // Predicated region
        $region33: #{tpu_custom_call.1} parent=31 // pred_check
          %p217 = pneg %p124
        $region34: #{tpu_custom_call.1} parent=31 // pred_check_branch
          %219 = sbr.rel (%p217) target = $region36
        $region35: #{tpu_custom_call.1} parent=31 // pred_region
          %s220 = sand.u32 %s114, 1
          %s221 = scalar_lea.sflag [#allocation10], %s220
          %s222 = sand.u32 %s114, 1
          %s223 = smul.addr %s222, 64
          %s224 = scalar_lea.vmem [#allocation9], %s223
          %s226 = ssub.s32 1024, 1024
          %227 = vsyncadd %s221, %s226
          %s228 = smul.addr %s20, 8
          %s229 = smul.addr %s228, 128
          %s230 = scalar_lea.hbm %s4, %s229
          %s231 = sshll.u32 %s224, 4
          %s232 = int_to_ptr.vmem [resolvable:$true] %s231
          %237 = dma.hbm_to_vmem [thread:$0]  %s230, 1024, %s232, %s221, 128, 128, 8
        $region36: #{tpu_custom_call.1} parent=31 // pred_fallthru
          _
      $region32: #{tpu_custom_call.1} parent=5 // pred_fallthru
        _
      %p238 = scmp.le.s32.totalorder 1, %s20
      %p239 = scmp.lt.s32.totalorder %s20, 3
      %p240 = pnand %p238, %p239
      %p241 = pneg %p240
      // Predicated region
      $region37: #{tpu_custom_call.1} parent=5 // pred_check
        _
      $region38: #{tpu_custom_call.1} parent=5 // pred_check_branch
        %243 = sbr.rel (%p240) target = $region40
      $region39: #{tpu_custom_call.1} parent=5 // pred_region
        %s244 = ssub.s32 %s20, 1
        // Predicated region
        $region41: #{tpu_custom_call.1} parent=39 // pred_check
          %p245 = pneg %p62
        $region42: #{tpu_custom_call.1} parent=39 // pred_check_branch
          %247 = sbr.rel (%p245) target = $region44
        $region43: #{tpu_custom_call.1} parent=39 // pred_region
          %248 = dma.done [#allocation4], 768
        $region44: #{tpu_custom_call.1} parent=39 // pred_fallthru
          _
        // Predicated region
        $region45: #{tpu_custom_call.1} parent=39 // pred_check
          %p249 = pneg %p83
        $region46: #{tpu_custom_call.1} parent=39 // pred_check_branch
          %251 = sbr.rel (%p249) target = $region48
        $region47: #{tpu_custom_call.1} parent=39 // pred_region
          %252 = dma.done [#allocation7], 768
        $region48: #{tpu_custom_call.1} parent=39 // pred_fallthru
          _
        // Predicated region
        $region49: #{tpu_custom_call.1} parent=39 // pred_check
          %p253 = pneg %p104
        $region50: #{tpu_custom_call.1} parent=39 // pred_check_branch
          %255 = sbr.rel (%p253) target = $region52
        $region51: #{tpu_custom_call.1} parent=39 // pred_region
          %256 = dma.done [#allocation7], 768
        $region52: #{tpu_custom_call.1} parent=39 // pred_fallthru
          _
        %s257 = sand.u32 %s117, 1
        %s258 = scalar_lea.sflag [#allocation10], %s257
        %s259 = sand.u32 %s117, 1
        %s260 = smul.addr %s259, 64
        %s261 = scalar_lea.vmem [#allocation9], %s260
        // Predicated region
        $region53: #{tpu_custom_call.1} parent=39 // pred_check
          %p262 = pneg %p130
        $region54: #{tpu_custom_call.1} parent=39 // pred_check_branch
          %264 = sbr.rel (%p262) target = $region56
        $region55: #{tpu_custom_call.1} parent=39 // pred_region
          %265 = dma.done %s258, 1024
        $region56: #{tpu_custom_call.1} parent=39 // pred_fallthru
          _
        %p266 = pneg %p41
        %p267 = pneg %p38
        %p268 = pneg %p62
        %p269 = pneg %p59
        %p270 = pneg %p83
        %p271 = pneg %p80
        %p272 = pneg %p104
        %p273 = pneg %p101
        %s274 = sand.u32 %s117, 1
        %s275 = scalar_lea.sflag [#allocation10], %s274
        %s276 = sand.u32 %s117, 1
        %s277 = smul.addr %s276, 64
        %s278 = scalar_lea.vmem [#allocation9], %s277
        %p279 = pneg %p130
        %p280 = pneg %p127
        %p281 = pneg %p156
        %p282 = pneg %p153
        %s283 = sand.u32 %s143, 1
        %s284 = scalar_lea.sflag [#allocation5], %s283
        %s285 = sand.u32 %s143, 1
        %s286 = smul.addr %s285, 4
        %s287 = scalar_lea.vmem [#allocation11], %s286
        %v288 = vld [vmem:[%s261] sm:$0xff]
        %v289 = vld [vmem:[%s261 + $0x8] sm:$0xff]
        %v290 = vld [vmem:[%s261 + $0x10] sm:$0xff]
        %v291 = vld [vmem:[%s261 + $0x18] sm:$0xff]
        %v292 = vld [vmem:[%s261 + $0x20] sm:$0xff]
        %v293 = vld [vmem:[%s261 + $0x28] sm:$0xff]
        %v294 = vld [vmem:[%s261 + $0x30] sm:$0xff]
        %v295 = vld [vmem:[%s261 + $0x38] sm:$0xff]
        %vm296 = vcmask 130048
        %v297 = vsel %vm296, %v288, -inf
        %v298 = vsel %vm296, %v290, -inf
        %v299 = vsel %vm296, %v292, -inf
        %v300 = vmax.f32 %v297, %v299
        %v301 = vsel %vm296, %v294, -inf
        %v302 = vmax.f32 %v298, %v301
        %v303 = vmax.f32 %v300, %v302
        %v304 = vsel %vm296, %v289, -inf
        %v305 = vsel %vm296, %v291, -inf
        %v306 = vsel %vm296, %v293, -inf
        %v307 = vmax.f32 %v304, %v306
        %v308 = vsel %vm296, %v295, -inf
        %v309 = vmax.f32 %v305, %v308
        %v310 = vmax.f32 %v307, %v309
        %v311 = vsel %vm296, %v288, 0.0
        %v312 = vsel %vm296, %v290, 0.0
        %v313 = vadd.f32 %v311, %v312
        %v314 = vsel %vm296, %v292, 0.0
        %v315 = vadd.f32 %v313, %v314
        %v316 = vsel %vm296, %v294, 0.0
        %v317 = vadd.f32 %v315, %v316
        %v318 = vsel %vm296, %v289, 0.0
        %v319 = vsel %vm296, %v291, 0.0
        %v320 = vadd.f32 %v318, %v319
        %v321 = vsel %vm296, %v293, 0.0
        %v322 = vadd.f32 %v320, %v321
        %v323 = vsel %vm296, %v295, 0.0
        %v324 = vadd.f32 %v322, %v323
        %s325 = sld [smem:[#allocation2]]
        %v326 = vstv %s325
        %v327 = vld [vmem:[#allocation6] sm:$0xff]
        %v328 = vld [vmem:[#allocation6 + $0x8] sm:$0xff]
        %v329 = vld [vmem:[#allocation8] sm:$0xff]
        %v330 = vld [vmem:[#allocation8 + $0x8] sm:$0xff]
        %v332 = vsel %vm296, %v317, 0
        %v335 = vsel %vm296, %v324, 0
        %337 = vmatprep.subr.mxu0 0.0
        %338 = vmatpush1.msra.mxu0 0.0
        %339 = vmatprep.subr.mxu0 0.0
        %340 = vmatpush1.msra.mxu0 0.0
        %341 = vmatprep.subr.mxu0 0.0
        %342 = vmatpush1.msra.mxu0 0.0
        %343 = vmatprep.subr.mxu0 0.0
        %344 = vmatpush1.msra.mxu0 0.0
        %345 = vmatprep.subr.mxu0 0.0
        %346 = vmatpush1.msra.mxu0 0.0
        %347 = vmatprep.subr.mxu0 0.0
        %348 = vmatpush1.msra.mxu0 0.0
        %349 = vmatprep.subr.mxu0 0.0
        %350 = vmatpush1.msra.mxu0 0.0
        %351 = vmatprep.subr.mxu0 0.0
        %352 = vmatpush1.msra.mxu0 0.0
        %353 = vmatprep.subr.mxu0 0.0
        %354 = vmatpush1.msra.mxu0 0.0
        %355 = vmatprep.subr.mxu0 0.0
        %356 = vmatpush1.msra.mxu0 0.0
        %357 = vmatprep.subr.mxu0 0.0
        %358 = vmatpush1.msra.mxu0 0.0
        %359 = vmatprep.subr.mxu0 0.0
        %360 = vmatpush1.msra.mxu0 0.0
        %361 = vmatprep.subr.mxu0 0.0
        %362 = vmatpush1.msra.mxu0 0.0
        %363 = vmatprep.subr.mxu0 0.0
        %364 = vmatpush1.msra.mxu0 0.0
        %365 = vmatprep.subr.mxu0 0.0
        %366 = vmatpush1.msra.mxu0 %v330
        %367 = vmatprep.subr.mxu0 0.0
        %368 = vmatpush1.msra.mxu0 %v329
        %369 = vmatprep.subr.mxu0 0.0
        %370 = vmatpush2.msra.mxu0 0.0
        %371 = vmatprep.subr.mxu0 0.0
        %372 = vmatpush2.msra.mxu0 0.0
        %373 = vmatprep.subr.mxu0 0.0
        %374 = vmatpush2.msra.mxu0 0.0
        %375 = vmatprep.subr.mxu0 0.0
        %376 = vmatpush2.msra.mxu0 0.0
        %377 = vmatprep.subr.mxu0 0.0
        %378 = vmatpush2.msra.mxu0 0.0
        %379 = vmatprep.subr.mxu0 0.0
        %380 = vmatpush2.msra.mxu0 0.0
        %381 = vmatprep.subr.mxu0 0.0
        %382 = vmatpush2.msra.mxu0 0.0
        %383 = vmatprep.subr.mxu0 0.0
        %384 = vmatpush2.msra.mxu0 0.0
        %385 = vmatprep.subr.mxu0 0.0
        %386 = vmatpush2.msra.mxu0 0.0
        %387 = vmatprep.subr.mxu0 0.0
        %388 = vmatpush2.msra.mxu0 0.0
        %389 = vmatprep.subr.mxu0 0.0
        %390 = vmatpush2.msra.mxu0 0.0
        %391 = vmatprep.subr.mxu0 0.0
        %392 = vmatpush2.msra.mxu0 0.0
        %393 = vmatprep.subr.mxu0 0.0
        %394 = vmatpush2.msra.mxu0 0.0
        %395 = vmatprep.subr.mxu0 0.0
        %396 = vmatpush2.msra.mxu0 0.0
        %397 = vmatprep.subr.mxu0 0.0
        %398 = vmatpush2.msra.mxu0 0.0
        %399 = vmatprep.subr.mxu0 0.0
        %400 = vmatpush2.msra.mxu0 0.0
        %401 = vmatprep.mubr.f32.mxu0 0.0
        %402 = vmatmul.mubr.f32.gmra.mxu0 %v332
        %v403 = vpop.f32.mrf.mxu0
        %v404 = vadd.f32 0.0, %v403
        %v405 = vpop.f32.mrf.mxu0
        %406 = vmatprep.mubr.f32.mxu0 0.0
        %407 = vmatmul.mubr.f32.gmra.mxu0 %v335
        %v408 = vpop.f32.mrf.mxu0
        %v409 = vadd.f32 0.0, %v408
        %v410 = vpop.f32.mrf.mxu0
        %411 = vdwg.mxu0
        %v413 = vsel %vm296, %v303, 0
        %v416 = vsel %vm296, %v310, 0
        %418 = vmatprep.subr.mxu0 0.0
        %419 = vmatpush1.msra.mxu0 0.0
        %420 = vmatprep.subr.mxu0 0.0
        %421 = vmatpush1.msra.mxu0 0.0
        %422 = vmatprep.subr.mxu0 0.0
        %423 = vmatpush1.msra.mxu0 0.0
        %424 = vmatprep.subr.mxu0 0.0
        %425 = vmatpush1.msra.mxu0 0.0
        %426 = vmatprep.subr.mxu0 0.0
        %427 = vmatpush1.msra.mxu0 0.0
        %428 = vmatprep.subr.mxu0 0.0
        %429 = vmatpush1.msra.mxu0 0.0
        %430 = vmatprep.subr.mxu0 0.0
        %431 = vmatpush1.msra.mxu0 0.0
        %432 = vmatprep.subr.mxu0 0.0
        %433 = vmatpush1.msra.mxu0 0.0
        %434 = vmatprep.subr.mxu0 0.0
        %435 = vmatpush1.msra.mxu0 0.0
        %436 = vmatprep.subr.mxu0 0.0
        %437 = vmatpush1.msra.mxu0 0.0
        %438 = vmatprep.subr.mxu0 0.0
        %439 = vmatpush1.msra.mxu0 0.0
        %440 = vmatprep.subr.mxu0 0.0
        %441 = vmatpush1.msra.mxu0 0.0
        %442 = vmatprep.subr.mxu0 0.0
        %443 = vmatpush1.msra.mxu0 0.0
        %444 = vmatprep.subr.mxu0 0.0
        %445 = vmatpush1.msra.mxu0 0.0
        %446 = vmatprep.subr.mxu0 0.0
        %447 = vmatpush1.msra.mxu0 %v328
        %448 = vmatprep.subr.mxu0 0.0
        %449 = vmatpush1.msra.mxu0 %v327
        %450 = vmatprep.subr.mxu0 0.0
        %451 = vmatpush2.msra.mxu0 0.0
        %452 = vmatprep.subr.mxu0 0.0
        %453 = vmatpush2.msra.mxu0 0.0
        %454 = vmatprep.subr.mxu0 0.0
        %455 = vmatpush2.msra.mxu0 0.0
        %456 = vmatprep.subr.mxu0 0.0
        %457 = vmatpush2.msra.mxu0 0.0
        %458 = vmatprep.subr.mxu0 0.0
        %459 = vmatpush2.msra.mxu0 0.0
        %460 = vmatprep.subr.mxu0 0.0
        %461 = vmatpush2.msra.mxu0 0.0
        %462 = vmatprep.subr.mxu0 0.0
        %463 = vmatpush2.msra.mxu0 0.0
        %464 = vmatprep.subr.mxu0 0.0
        %465 = vmatpush2.msra.mxu0 0.0
        %466 = vmatprep.subr.mxu0 0.0
        %467 = vmatpush2.msra.mxu0 0.0
        %468 = vmatprep.subr.mxu0 0.0
        %469 = vmatpush2.msra.mxu0 0.0
        %470 = vmatprep.subr.mxu0 0.0
        %471 = vmatpush2.msra.mxu0 0.0
        %472 = vmatprep.subr.mxu0 0.0
        %473 = vmatpush2.msra.mxu0 0.0
        %474 = vmatprep.subr.mxu0 0.0
        %475 = vmatpush2.msra.mxu0 0.0
        %476 = vmatprep.subr.mxu0 0.0
        %477 = vmatpush2.msra.mxu0 0.0
        %478 = vmatprep.subr.mxu0 0.0
        %479 = vmatpush2.msra.mxu0 0.0
        %480 = vmatprep.subr.mxu0 0.0
        %481 = vmatpush2.msra.mxu0 0.0
        %482 = vmatprep.mubr.f32.mxu0 0.0
        %483 = vmatmul.mubr.f32.gmra.mxu0 %v413
        %v484 = vpop.f32.mrf.mxu0
        %v485 = vadd.f32 %v404, %v484
        %v486 = vpop.f32.mrf.mxu0
        %487 = vmatprep.mubr.f32.mxu0 0.0
        %488 = vmatmul.mubr.f32.gmra.mxu0 %v416
        %v489 = vpop.f32.mrf.mxu0
        %v490 = vadd.f32 %v409, %v489
        %v491 = vpop.f32.mrf.mxu0
        %492 = vdwg.mxu0
        %v493 = vld [vmem:[#allocation3] sm:$0xff]
        %v494 = vld [vmem:[#allocation3 + $0x8] sm:$0xff]
        %v496 = vsel %vm296, %v493, 0
        %v499 = vsel %vm296, %v494, 0
        %501 = vmatprep.subr.mxu0 0.0
        %502 = vmatpush1.msra.mxu0 0.0
        %503 = vmatprep.subr.mxu0 0.0
        %504 = vmatpush1.msra.mxu0 0.0
        %505 = vmatprep.subr.mxu0 0.0
        %506 = vmatpush1.msra.mxu0 0.0
        %507 = vmatprep.subr.mxu0 0.0
        %508 = vmatpush1.msra.mxu0 0.0
        %509 = vmatprep.subr.mxu0 0.0
        %510 = vmatpush1.msra.mxu0 0.0
        %511 = vmatprep.subr.mxu0 0.0
        %512 = vmatpush1.msra.mxu0 0.0
        %513 = vmatprep.subr.mxu0 0.0
        %514 = vmatpush1.msra.mxu0 0.0
        %515 = vmatprep.subr.mxu0 0.0
        %516 = vmatpush1.msra.mxu0 0.0
        %517 = vmatprep.subr.mxu0 0.0
        %518 = vmatpush1.msra.mxu0 0.0
        %519 = vmatprep.subr.mxu0 0.0
        %520 = vmatpush1.msra.mxu0 0.0
        %521 = vmatprep.subr.mxu0 0.0
        %522 = vmatpush1.msra.mxu0 0.0
        %523 = vmatprep.subr.mxu0 0.0
        %524 = vmatpush1.msra.mxu0 0.0
        %525 = vmatprep.subr.mxu0 0.0
        %526 = vmatpush1.msra.mxu0 0.0
        %527 = vmatprep.subr.mxu0 0.0
        %528 = vmatpush1.msra.mxu0 0.0
        %529 = vmatprep.subr.mxu0 0.0
        %530 = vmatpush1.msra.mxu0 %v490
        %531 = vmatprep.subr.mxu0 0.0
        %532 = vmatpush1.msra.mxu0 %v485
        %533 = vmatprep.subr.mxu0 0.0
        %534 = vmatpush2.msra.mxu0 0.0
        %535 = vmatprep.subr.mxu0 0.0
        %536 = vmatpush2.msra.mxu0 0.0
        %537 = vmatprep.subr.mxu0 0.0
        %538 = vmatpush2.msra.mxu0 0.0
        %539 = vmatprep.subr.mxu0 0.0
        %540 = vmatpush2.msra.mxu0 0.0
        %541 = vmatprep.subr.mxu0 0.0
        %542 = vmatpush2.msra.mxu0 0.0
        %543 = vmatprep.subr.mxu0 0.0
        %544 = vmatpush2.msra.mxu0 0.0
        %545 = vmatprep.subr.mxu0 0.0
        %546 = vmatpush2.msra.mxu0 0.0
        %547 = vmatprep.subr.mxu0 0.0
        %548 = vmatpush2.msra.mxu0 0.0
        %549 = vmatprep.subr.mxu0 0.0
        %550 = vmatpush2.msra.mxu0 0.0
        %551 = vmatprep.subr.mxu0 0.0
        %552 = vmatpush2.msra.mxu0 0.0
        %553 = vmatprep.subr.mxu0 0.0
        %554 = vmatpush2.msra.mxu0 0.0
        %555 = vmatprep.subr.mxu0 0.0
        %556 = vmatpush2.msra.mxu0 0.0
        %557 = vmatprep.subr.mxu0 0.0
        %558 = vmatpush2.msra.mxu0 0.0
        %559 = vmatprep.subr.mxu0 0.0
        %560 = vmatpush2.msra.mxu0 0.0
        %561 = vmatprep.subr.mxu0 0.0
        %562 = vmatpush2.msra.mxu0 0.0
        %563 = vmatprep.subr.mxu0 0.0
        %564 = vmatpush2.msra.mxu0 0.0
        %565 = vmatprep.mubr.f32.mxu0 0.0
        %566 = vmatmul.mubr.f32.gmra.mxu0 %v496
        %v567 = vpop.f32.mrf.mxu0
        %v568 = vadd.f32 0.0, %v567
        %v569 = vpop.f32.mrf.mxu0
        %570 = vmatprep.mubr.f32.mxu0 0.0
        %571 = vmatmul.mubr.f32.gmra.mxu0 %v499
        %v572 = vpop.f32.mrf.mxu0
        %v573 = vadd.f32 0.0, %v572
        %v574 = vpop.f32.mrf.mxu0
        %575 = vdwg.mxu0
        %v576 = vadd.f32 %v326, %v568
        %v577 = vadd.f32 %v326, %v573
        %s578 = scalar_lea.vmem [#allocation6], 16
        %v579 = vld [vmem:[%s578] sm:$0xff]
        %v580 = vld [vmem:[%s578 + $0x8] sm:$0xff]
        %s581 = scalar_lea.vmem [#allocation8], 16
        %v582 = vld [vmem:[%s581] sm:$0xff]
        %v583 = vld [vmem:[%s581 + $0x8] sm:$0xff]
        %584 = vmatprep.subr.mxu0 0.0
        %585 = vmatpush1.msra.mxu0 0.0
        %586 = vmatprep.subr.mxu0 0.0
        %587 = vmatpush1.msra.mxu0 0.0
        %588 = vmatprep.subr.mxu0 0.0
        %589 = vmatpush1.msra.mxu0 0.0
        %590 = vmatprep.subr.mxu0 0.0
        %591 = vmatpush1.msra.mxu0 0.0
        %592 = vmatprep.subr.mxu0 0.0
        %593 = vmatpush1.msra.mxu0 0.0
        %594 = vmatprep.subr.mxu0 0.0
        %595 = vmatpush1.msra.mxu0 0.0
        %596 = vmatprep.subr.mxu0 0.0
        %597 = vmatpush1.msra.mxu0 0.0
        %598 = vmatprep.subr.mxu0 0.0
        %599 = vmatpush1.msra.mxu0 0.0
        %600 = vmatprep.subr.mxu0 0.0
        %601 = vmatpush1.msra.mxu0 0.0
        %602 = vmatprep.subr.mxu0 0.0
        %603 = vmatpush1.msra.mxu0 0.0
        %604 = vmatprep.subr.mxu0 0.0
        %605 = vmatpush1.msra.mxu0 0.0
        %606 = vmatprep.subr.mxu0 0.0
        %607 = vmatpush1.msra.mxu0 0.0
        %608 = vmatprep.subr.mxu0 0.0
        %609 = vmatpush1.msra.mxu0 0.0
        %610 = vmatprep.subr.mxu0 0.0
        %611 = vmatpush1.msra.mxu0 0.0
        %612 = vmatprep.subr.mxu0 0.0
        %613 = vmatpush1.msra.mxu0 %v583
        %614 = vmatprep.subr.mxu0 0.0
        %615 = vmatpush1.msra.mxu0 %v582
        %616 = vmatprep.subr.mxu0 0.0
        %617 = vmatpush2.msra.mxu0 0.0
        %618 = vmatprep.subr.mxu0 0.0
        %619 = vmatpush2.msra.mxu0 0.0
        %620 = vmatprep.subr.mxu0 0.0
        %621 = vmatpush2.msra.mxu0 0.0
        %622 = vmatprep.subr.mxu0 0.0
        %623 = vmatpush2.msra.mxu0 0.0
        %624 = vmatprep.subr.mxu0 0.0
        %625 = vmatpush2.msra.mxu0 0.0
        %626 = vmatprep.subr.mxu0 0.0
        %627 = vmatpush2.msra.mxu0 0.0
        %628 = vmatprep.subr.mxu0 0.0
        %629 = vmatpush2.msra.mxu0 0.0
        %630 = vmatprep.subr.mxu0 0.0
        %631 = vmatpush2.msra.mxu0 0.0
        %632 = vmatprep.subr.mxu0 0.0
        %633 = vmatpush2.msra.mxu0 0.0
        %634 = vmatprep.subr.mxu0 0.0
        %635 = vmatpush2.msra.mxu0 0.0
        %636 = vmatprep.subr.mxu0 0.0
        %637 = vmatpush2.msra.mxu0 0.0
        %638 = vmatprep.subr.mxu0 0.0
        %639 = vmatpush2.msra.mxu0 0.0
        %640 = vmatprep.subr.mxu0 0.0
        %641 = vmatpush2.msra.mxu0 0.0
        %642 = vmatprep.subr.mxu0 0.0
        %643 = vmatpush2.msra.mxu0 0.0
        %644 = vmatprep.subr.mxu0 0.0
        %645 = vmatpush2.msra.mxu0 0.0
        %646 = vmatprep.subr.mxu0 0.0
        %647 = vmatpush2.msra.mxu0 0.0
        %648 = vmatprep.mubr.f32.mxu0 0.0
        %649 = vmatmul.mubr.f32.gmra.mxu0 %v332
        %v650 = vpop.f32.mrf.mxu0
        %v651 = vadd.f32 0.0, %v650
        %v652 = vpop.f32.mrf.mxu0
        %653 = vmatprep.mubr.f32.mxu0 0.0
        %654 = vmatmul.mubr.f32.gmra.mxu0 %v335
        %v655 = vpop.f32.mrf.mxu0
        %v656 = vadd.f32 0.0, %v655
        %v657 = vpop.f32.mrf.mxu0
        %658 = vdwg.mxu0
        %659 = vmatprep.subr.mxu0 0.0
        %660 = vmatpush1.msra.mxu0 0.0
        %661 = vmatprep.subr.mxu0 0.0
        %662 = vmatpush1.msra.mxu0 0.0
        %663 = vmatprep.subr.mxu0 0.0
        %664 = vmatpush1.msra.mxu0 0.0
        %665 = vmatprep.subr.mxu0 0.0
        %666 = vmatpush1.msra.mxu0 0.0
        %667 = vmatprep.subr.mxu0 0.0
        %668 = vmatpush1.msra.mxu0 0.0
        %669 = vmatprep.subr.mxu0 0.0
        %670 = vmatpush1.msra.mxu0 0.0
        %671 = vmatprep.subr.mxu0 0.0
        %672 = vmatpush1.msra.mxu0 0.0
        %673 = vmatprep.subr.mxu0 0.0
        %674 = vmatpush1.msra.mxu0 0.0
        %675 = vmatprep.subr.mxu0 0.0
        %676 = vmatpush1.msra.mxu0 0.0
        %677 = vmatprep.subr.mxu0 0.0
        %678 = vmatpush1.msra.mxu0 0.0
        %679 = vmatprep.subr.mxu0 0.0
        %680 = vmatpush1.msra.mxu0 0.0
        %681 = vmatprep.subr.mxu0 0.0
        %682 = vmatpush1.msra.mxu0 0.0
        %683 = vmatprep.subr.mxu0 0.0
        %684 = vmatpush1.msra.mxu0 0.0
        %685 = vmatprep.subr.mxu0 0.0
        %686 = vmatpush1.msra.mxu0 0.0
        %687 = vmatprep.subr.mxu0 0.0
        %688 = vmatpush1.msra.mxu0 %v580
        %689 = vmatprep.subr.mxu0 0.0
        %690 = vmatpush1.msra.mxu0 %v579
        %691 = vmatprep.subr.mxu0 0.0
        %692 = vmatpush2.msra.mxu0 0.0
        %693 = vmatprep.subr.mxu0 0.0
        %694 = vmatpush2.msra.mxu0 0.0
        %695 = vmatprep.subr.mxu0 0.0
        %696 = vmatpush2.msra.mxu0 0.0
        %697 = vmatprep.subr.mxu0 0.0
        %698 = vmatpush2.msra.mxu0 0.0
        %699 = vmatprep.subr.mxu0 0.0
        %700 = vmatpush2.msra.mxu0 0.0
        %701 = vmatprep.subr.mxu0 0.0
        %702 = vmatpush2.msra.mxu0 0.0
        %703 = vmatprep.subr.mxu0 0.0
        %704 = vmatpush2.msra.mxu0 0.0
        %705 = vmatprep.subr.mxu0 0.0
        %706 = vmatpush2.msra.mxu0 0.0
        %707 = vmatprep.subr.mxu0 0.0
        %708 = vmatpush2.msra.mxu0 0.0
        %709 = vmatprep.subr.mxu0 0.0
        %710 = vmatpush2.msra.mxu0 0.0
        %711 = vmatprep.subr.mxu0 0.0
        %712 = vmatpush2.msra.mxu0 0.0
        %713 = vmatprep.subr.mxu0 0.0
        %714 = vmatpush2.msra.mxu0 0.0
        %715 = vmatprep.subr.mxu0 0.0
        %716 = vmatpush2.msra.mxu0 0.0
        %717 = vmatprep.subr.mxu0 0.0
        %718 = vmatpush2.msra.mxu0 0.0
        %719 = vmatprep.subr.mxu0 0.0
        %720 = vmatpush2.msra.mxu0 0.0
        %721 = vmatprep.subr.mxu0 0.0
        %722 = vmatpush2.msra.mxu0 0.0
        %723 = vmatprep.mubr.f32.mxu0 0.0
        %724 = vmatmul.mubr.f32.gmra.mxu0 %v413
        %v725 = vpop.f32.mrf.mxu0
        %v726 = vadd.f32 %v651, %v725
        %v727 = vpop.f32.mrf.mxu0
        %728 = vmatprep.mubr.f32.mxu0 0.0
        %729 = vmatmul.mubr.f32.gmra.mxu0 %v416
        %v730 = vpop.f32.mrf.mxu0
        %v731 = vadd.f32 %v656, %v730
        %v732 = vpop.f32.mrf.mxu0
        %733 = vdwg.mxu0
        %s734 = scalar_lea.vmem [#allocation3], 16
        %v735 = vld [vmem:[%s734] sm:$0xff]
        %v736 = vld [vmem:[%s734 + $0x8] sm:$0xff]
        %v738 = vsel %vm296, %v735, 0
        %v741 = vsel %vm296, %v736, 0
        %743 = vmatprep.subr.mxu0 0.0
        %744 = vmatpush1.msra.mxu0 0.0
        %745 = vmatprep.subr.mxu0 0.0
        %746 = vmatpush1.msra.mxu0 0.0
        %747 = vmatprep.subr.mxu0 0.0
        %748 = vmatpush1.msra.mxu0 0.0
        %749 = vmatprep.subr.mxu0 0.0
        %750 = vmatpush1.msra.mxu0 0.0
        %751 = vmatprep.subr.mxu0 0.0
        %752 = vmatpush1.msra.mxu0 0.0
        %753 = vmatprep.subr.mxu0 0.0
        %754 = vmatpush1.msra.mxu0 0.0
        %755 = vmatprep.subr.mxu0 0.0
        %756 = vmatpush1.msra.mxu0 0.0
        %757 = vmatprep.subr.mxu0 0.0
        %758 = vmatpush1.msra.mxu0 0.0
        %759 = vmatprep.subr.mxu0 0.0
        %760 = vmatpush1.msra.mxu0 0.0
        %761 = vmatprep.subr.mxu0 0.0
        %762 = vmatpush1.msra.mxu0 0.0
        %763 = vmatprep.subr.mxu0 0.0
        %764 = vmatpush1.msra.mxu0 0.0
        %765 = vmatprep.subr.mxu0 0.0
        %766 = vmatpush1.msra.mxu0 0.0
        %767 = vmatprep.subr.mxu0 0.0
        %768 = vmatpush1.msra.mxu0 0.0
        %769 = vmatprep.subr.mxu0 0.0
        %770 = vmatpush1.msra.mxu0 0.0
        %771 = vmatprep.subr.mxu0 0.0
        %772 = vmatpush1.msra.mxu0 %v731
        %773 = vmatprep.subr.mxu0 0.0
        %774 = vmatpush1.msra.mxu0 %v726
        %775 = vmatprep.subr.mxu0 0.0
        %776 = vmatpush2.msra.mxu0 0.0
        %777 = vmatprep.subr.mxu0 0.0
        %778 = vmatpush2.msra.mxu0 0.0
        %779 = vmatprep.subr.mxu0 0.0
        %780 = vmatpush2.msra.mxu0 0.0
        %781 = vmatprep.subr.mxu0 0.0
        %782 = vmatpush2.msra.mxu0 0.0
        %783 = vmatprep.subr.mxu0 0.0
        %784 = vmatpush2.msra.mxu0 0.0
        %785 = vmatprep.subr.mxu0 0.0
        %786 = vmatpush2.msra.mxu0 0.0
        %787 = vmatprep.subr.mxu0 0.0
        %788 = vmatpush2.msra.mxu0 0.0
        %789 = vmatprep.subr.mxu0 0.0
        %790 = vmatpush2.msra.mxu0 0.0
        %791 = vmatprep.subr.mxu0 0.0
        %792 = vmatpush2.msra.mxu0 0.0
        %793 = vmatprep.subr.mxu0 0.0
        %794 = vmatpush2.msra.mxu0 0.0
        %795 = vmatprep.subr.mxu0 0.0
        %796 = vmatpush2.msra.mxu0 0.0
        %797 = vmatprep.subr.mxu0 0.0
        %798 = vmatpush2.msra.mxu0 0.0
        %799 = vmatprep.subr.mxu0 0.0
        %800 = vmatpush2.msra.mxu0 0.0
        %801 = vmatprep.subr.mxu0 0.0
        %802 = vmatpush2.msra.mxu0 0.0
        %803 = vmatprep.subr.mxu0 0.0
        %804 = vmatpush2.msra.mxu0 0.0
        %805 = vmatprep.subr.mxu0 0.0
        %806 = vmatpush2.msra.mxu0 0.0
        %807 = vmatprep.mubr.f32.mxu0 0.0
        %808 = vmatmul.mubr.f32.gmra.mxu0 %v738
        %v809 = vpop.f32.mrf.mxu0
        %v810 = vadd.f32 0.0, %v809
        %v811 = vpop.f32.mrf.mxu0
        %812 = vmatprep.mubr.f32.mxu0 0.0
        %813 = vmatmul.mubr.f32.gmra.mxu0 %v741
        %v814 = vpop.f32.mrf.mxu0
        %v815 = vadd.f32 0.0, %v814
        %v816 = vpop.f32.mrf.mxu0
        %817 = vdwg.mxu0
        %v818 = vadd.f32 %v576, %v810
        %v819 = vadd.f32 %v577, %v815
        %s820 = scalar_lea.vmem [#allocation6], 32
        %v821 = vld [vmem:[%s820] sm:$0xff]
        %v822 = vld [vmem:[%s820 + $0x8] sm:$0xff]
        %s823 = scalar_lea.vmem [#allocation8], 32
        %v824 = vld [vmem:[%s823] sm:$0xff]
        %v825 = vld [vmem:[%s823 + $0x8] sm:$0xff]
        %826 = vmatprep.subr.mxu0 0.0
        %827 = vmatpush1.msra.mxu0 0.0
        %828 = vmatprep.subr.mxu0 0.0
        %829 = vmatpush1.msra.mxu0 0.0
        %830 = vmatprep.subr.mxu0 0.0
        %831 = vmatpush1.msra.mxu0 0.0
        %832 = vmatprep.subr.mxu0 0.0
        %833 = vmatpush1.msra.mxu0 0.0
        %834 = vmatprep.subr.mxu0 0.0
        %835 = vmatpush1.msra.mxu0 0.0
        %836 = vmatprep.subr.mxu0 0.0
        %837 = vmatpush1.msra.mxu0 0.0
        %838 = vmatprep.subr.mxu0 0.0
        %839 = vmatpush1.msra.mxu0 0.0
        %840 = vmatprep.subr.mxu0 0.0
        %841 = vmatpush1.msra.mxu0 0.0
        %842 = vmatprep.subr.mxu0 0.0
        %843 = vmatpush1.msra.mxu0 0.0
        %844 = vmatprep.subr.mxu0 0.0
        %845 = vmatpush1.msra.mxu0 0.0
        %846 = vmatprep.subr.mxu0 0.0
        %847 = vmatpush1.msra.mxu0 0.0
        %848 = vmatprep.subr.mxu0 0.0
        %849 = vmatpush1.msra.mxu0 0.0
        %850 = vmatprep.subr.mxu0 0.0
        %851 = vmatpush1.msra.mxu0 0.0
        %852 = vmatprep.subr.mxu0 0.0
        %853 = vmatpush1.msra.mxu0 0.0
        %854 = vmatprep.subr.mxu0 0.0
        %855 = vmatpush1.msra.mxu0 %v825
        %856 = vmatprep.subr.mxu0 0.0
        %857 = vmatpush1.msra.mxu0 %v824
        %858 = vmatprep.subr.mxu0 0.0
        %859 = vmatpush2.msra.mxu0 0.0
        %860 = vmatprep.subr.mxu0 0.0
        %861 = vmatpush2.msra.mxu0 0.0
        %862 = vmatprep.subr.mxu0 0.0
        %863 = vmatpush2.msra.mxu0 0.0
        %864 = vmatprep.subr.mxu0 0.0
        %865 = vmatpush2.msra.mxu0 0.0
        %866 = vmatprep.subr.mxu0 0.0
        %867 = vmatpush2.msra.mxu0 0.0
        %868 = vmatprep.subr.mxu0 0.0
        %869 = vmatpush2.msra.mxu0 0.0
        %870 = vmatprep.subr.mxu0 0.0
        %871 = vmatpush2.msra.mxu0 0.0
        %872 = vmatprep.subr.mxu0 0.0
        %873 = vmatpush2.msra.mxu0 0.0
        %874 = vmatprep.subr.mxu0 0.0
        %875 = vmatpush2.msra.mxu0 0.0
        %876 = vmatprep.subr.mxu0 0.0
        %877 = vmatpush2.msra.mxu0 0.0
        %878 = vmatprep.subr.mxu0 0.0
        %879 = vmatpush2.msra.mxu0 0.0
        %880 = vmatprep.subr.mxu0 0.0
        %881 = vmatpush2.msra.mxu0 0.0
        %882 = vmatprep.subr.mxu0 0.0
        %883 = vmatpush2.msra.mxu0 0.0
        %884 = vmatprep.subr.mxu0 0.0
        %885 = vmatpush2.msra.mxu0 0.0
        %886 = vmatprep.subr.mxu0 0.0
        %887 = vmatpush2.msra.mxu0 0.0
        %888 = vmatprep.subr.mxu0 0.0
        %889 = vmatpush2.msra.mxu0 0.0
        %890 = vmatprep.mubr.f32.mxu0 0.0
        %891 = vmatmul.mubr.f32.gmra.mxu0 %v332
        %v892 = vpop.f32.mrf.mxu0
        %v893 = vadd.f32 0.0, %v892
        %v894 = vpop.f32.mrf.mxu0
        %895 = vmatprep.mubr.f32.mxu0 0.0
        %896 = vmatmul.mubr.f32.gmra.mxu0 %v335
        %v897 = vpop.f32.mrf.mxu0
        %v898 = vadd.f32 0.0, %v897
        %v899 = vpop.f32.mrf.mxu0
        %900 = vdwg.mxu0
        %901 = vmatprep.subr.mxu0 0.0
        %902 = vmatpush1.msra.mxu0 0.0
        %903 = vmatprep.subr.mxu0 0.0
        %904 = vmatpush1.msra.mxu0 0.0
        %905 = vmatprep.subr.mxu0 0.0
        %906 = vmatpush1.msra.mxu0 0.0
        %907 = vmatprep.subr.mxu0 0.0
        %908 = vmatpush1.msra.mxu0 0.0
        %909 = vmatprep.subr.mxu0 0.0
        %910 = vmatpush1.msra.mxu0 0.0
        %911 = vmatprep.subr.mxu0 0.0
        %912 = vmatpush1.msra.mxu0 0.0
        %913 = vmatprep.subr.mxu0 0.0
        %914 = vmatpush1.msra.mxu0 0.0
        %915 = vmatprep.subr.mxu0 0.0
        %916 = vmatpush1.msra.mxu0 0.0
        %917 = vmatprep.subr.mxu0 0.0
        %918 = vmatpush1.msra.mxu0 0.0
        %919 = vmatprep.subr.mxu0 0.0
        %920 = vmatpush1.msra.mxu0 0.0
        %921 = vmatprep.subr.mxu0 0.0
        %922 = vmatpush1.msra.mxu0 0.0
        %923 = vmatprep.subr.mxu0 0.0
        %924 = vmatpush1.msra.mxu0 0.0
        %925 = vmatprep.subr.mxu0 0.0
        %926 = vmatpush1.msra.mxu0 0.0
        %927 = vmatprep.subr.mxu0 0.0
        %928 = vmatpush1.msra.mxu0 0.0
        %929 = vmatprep.subr.mxu0 0.0
        %930 = vmatpush1.msra.mxu0 %v822
        %931 = vmatprep.subr.mxu0 0.0
        %932 = vmatpush1.msra.mxu0 %v821
        %933 = vmatprep.subr.mxu0 0.0
        %934 = vmatpush2.msra.mxu0 0.0
        %935 = vmatprep.subr.mxu0 0.0
        %936 = vmatpush2.msra.mxu0 0.0
        %937 = vmatprep.subr.mxu0 0.0
        %938 = vmatpush2.msra.mxu0 0.0
        %939 = vmatprep.subr.mxu0 0.0
        %940 = vmatpush2.msra.mxu0 0.0
        %941 = vmatprep.subr.mxu0 0.0
        %942 = vmatpush2.msra.mxu0 0.0
        %943 = vmatprep.subr.mxu0 0.0
        %944 = vmatpush2.msra.mxu0 0.0
        %945 = vmatprep.subr.mxu0 0.0
        %946 = vmatpush2.msra.mxu0 0.0
        %947 = vmatprep.subr.mxu0 0.0
        %948 = vmatpush2.msra.mxu0 0.0
        %949 = vmatprep.subr.mxu0 0.0
        %950 = vmatpush2.msra.mxu0 0.0
        %951 = vmatprep.subr.mxu0 0.0
        %952 = vmatpush2.msra.mxu0 0.0
        %953 = vmatprep.subr.mxu0 0.0
        %954 = vmatpush2.msra.mxu0 0.0
        %955 = vmatprep.subr.mxu0 0.0
        %956 = vmatpush2.msra.mxu0 0.0
        %957 = vmatprep.subr.mxu0 0.0
        %958 = vmatpush2.msra.mxu0 0.0
        %959 = vmatprep.subr.mxu0 0.0
        %960 = vmatpush2.msra.mxu0 0.0
        %961 = vmatprep.subr.mxu0 0.0
        %962 = vmatpush2.msra.mxu0 0.0
        %963 = vmatprep.subr.mxu0 0.0
        %964 = vmatpush2.msra.mxu0 0.0
        %965 = vmatprep.mubr.f32.mxu0 0.0
        %966 = vmatmul.mubr.f32.gmra.mxu0 %v413
        %v967 = vpop.f32.mrf.mxu0
        %v968 = vadd.f32 %v893, %v967
        %v969 = vpop.f32.mrf.mxu0
        %970 = vmatprep.mubr.f32.mxu0 0.0
        %971 = vmatmul.mubr.f32.gmra.mxu0 %v416
        %v972 = vpop.f32.mrf.mxu0
        %v973 = vadd.f32 %v898, %v972
        %v974 = vpop.f32.mrf.mxu0
        %975 = vdwg.mxu0
        %s976 = scalar_lea.vmem [#allocation3], 32
        %v977 = vld [vmem:[%s976] sm:$0xff]
        %v978 = vld [vmem:[%s976 + $0x8] sm:$0xff]
        %v980 = vsel %vm296, %v977, 0
        %v983 = vsel %vm296, %v978, 0
        %985 = vmatprep.subr.mxu0 0.0
        %986 = vmatpush1.msra.mxu0 0.0
        %987 = vmatprep.subr.mxu0 0.0
        %988 = vmatpush1.msra.mxu0 0.0
        %989 = vmatprep.subr.mxu0 0.0
        %990 = vmatpush1.msra.mxu0 0.0
        %991 = vmatprep.subr.mxu0 0.0
        %992 = vmatpush1.msra.mxu0 0.0
        %993 = vmatprep.subr.mxu0 0.0
        %994 = vmatpush1.msra.mxu0 0.0
        %995 = vmatprep.subr.mxu0 0.0
        %996 = vmatpush1.msra.mxu0 0.0
        %997 = vmatprep.subr.mxu0 0.0
        %998 = vmatpush1.msra.mxu0 0.0
        %999 = vmatprep.subr.mxu0 0.0
        %1000 = vmatpush1.msra.mxu0 0.0
        %1001 = vmatprep.subr.mxu0 0.0
        %1002 = vmatpush1.msra.mxu0 0.0
        %1003 = vmatprep.subr.mxu0 0.0
        %1004 = vmatpush1.msra.mxu0 0.0
        %1005 = vmatprep.subr.mxu0 0.0
        %1006 = vmatpush1.msra.mxu0 0.0
        %1007 = vmatprep.subr.mxu0 0.0
        %1008 = vmatpush1.msra.mxu0 0.0
        %1009 = vmatprep.subr.mxu0 0.0
        %1010 = vmatpush1.msra.mxu0 0.0
        %1011 = vmatprep.subr.mxu0 0.0
        %1012 = vmatpush1.msra.mxu0 0.0
        %1013 = vmatprep.subr.mxu0 0.0
        %1014 = vmatpush1.msra.mxu0 %v973
        %1015 = vmatprep.subr.mxu0 0.0
        %1016 = vmatpush1.msra.mxu0 %v968
        %1017 = vmatprep.subr.mxu0 0.0
        %1018 = vmatpush2.msra.mxu0 0.0
        %1019 = vmatprep.subr.mxu0 0.0
        %1020 = vmatpush2.msra.mxu0 0.0
        %1021 = vmatprep.subr.mxu0 0.0
        %1022 = vmatpush2.msra.mxu0 0.0
        %1023 = vmatprep.subr.mxu0 0.0
        %1024 = vmatpush2.msra.mxu0 0.0
        %1025 = vmatprep.subr.mxu0 0.0
        %1026 = vmatpush2.msra.mxu0 0.0
        %1027 = vmatprep.subr.mxu0 0.0
        %1028 = vmatpush2.msra.mxu0 0.0
        %1029 = vmatprep.subr.mxu0 0.0
        %1030 = vmatpush2.msra.mxu0 0.0
        %1031 = vmatprep.subr.mxu0 0.0
        %1032 = vmatpush2.msra.mxu0 0.0
        %1033 = vmatprep.subr.mxu0 0.0
        %1034 = vmatpush2.msra.mxu0 0.0
        %1035 = vmatprep.subr.mxu0 0.0
        %1036 = vmatpush2.msra.mxu0 0.0
        %1037 = vmatprep.subr.mxu0 0.0
        %1038 = vmatpush2.msra.mxu0 0.0
        %1039 = vmatprep.subr.mxu0 0.0
        %1040 = vmatpush2.msra.mxu0 0.0
        %1041 = vmatprep.subr.mxu0 0.0
        %1042 = vmatpush2.msra.mxu0 0.0
        %1043 = vmatprep.subr.mxu0 0.0
        %1044 = vmatpush2.msra.mxu0 0.0
        %1045 = vmatprep.subr.mxu0 0.0
        %1046 = vmatpush2.msra.mxu0 0.0
        %1047 = vmatprep.subr.mxu0 0.0
        %1048 = vmatpush2.msra.mxu0 0.0
        %1049 = vmatprep.mubr.f32.mxu0 0.0
        %1050 = vmatmul.mubr.f32.gmra.mxu0 %v980
        %v1051 = vpop.f32.mrf.mxu0
        %v1052 = vadd.f32 0.0, %v1051
        %v1053 = vpop.f32.mrf.mxu0
        %1054 = vmatprep.mubr.f32.mxu0 0.0
        %1055 = vmatmul.mubr.f32.gmra.mxu0 %v983
        %v1056 = vpop.f32.mrf.mxu0
        %v1057 = vadd.f32 0.0, %v1056
        %v1058 = vpop.f32.mrf.mxu0
        %1059 = vdwg.mxu0
        %v1060 = vadd.f32 %v818, %v1052
        %v1061 = vadd.f32 %v819, %v1057
        %v1062 = vxor.u32 %v1060, 2147483648
        %v1063 = vxor.u32 %v1061, 2147483648
        %v1064 = vmul.f32 %v1062, 1.442695
        %v1065 = vpow.pop %v1064
        %v1066 = vmul.f32 %v1063, 1.442695
        %v1067 = vpow.pop %v1066
        %v1068 = vadd.f32 %v1065, 1.0
        %v1069 = vadd.f32 %v1067, 1.0
        %v1070 = vrcp.pop %v1068
        %v1071 = vmul.f32 1.0, %v1070
        %v1072 = vrcp.pop %v1069
        %v1073 = vmul.f32 1.0, %v1072
        %v1074 = vmul.f32 %v288, %v1071
        %v1075 = vmul.f32 %v289, %v1073
        %v1076 = vmul.f32 %v290, %v1071
        %v1077 = vmul.f32 %v291, %v1073
        %v1078 = vmul.f32 %v292, %v1071
        %v1079 = vmul.f32 %v293, %v1073
        %v1080 = vmul.f32 %v294, %v1071
        %v1081 = vmul.f32 %v295, %v1073
        %v1082 = vsel %vm296, %v1074, 0.0
        %v1083 = vsel %vm296, %v1075, 0.0
        %v1084 = vadd.f32 %v1082, %v1083
        %v1085 = vrot.slane %v1084, 4
        %v1086 = vadd.f32 %v1084, %v1085
        %v1087 = vrot.slane %v1086, 2
        %v1088 = vadd.f32 %v1086, %v1087
        %v1089 = vrot.slane %v1088, 1
        %v1090 = vadd.f32 %v1088, %v1089
        %v1091 = vsel %vm296, %v1076, 0.0
        %v1092 = vsel %vm296, %v1077, 0.0
        %v1093 = vadd.f32 %v1091, %v1092
        %v1094 = vrot.slane %v1093, 4
        %v1095 = vadd.f32 %v1093, %v1094
        %v1096 = vrot.slane %v1095, 2
        %v1097 = vadd.f32 %v1095, %v1096
        %v1098 = vrot.slane %v1097, 1
        %v1099 = vadd.f32 %v1097, %v1098
        %v1100 = vsel %vm296, %v1078, 0.0
        %v1101 = vsel %vm296, %v1079, 0.0
        %v1102 = vadd.f32 %v1100, %v1101
        %v1103 = vrot.slane %v1102, 4
        %v1104 = vadd.f32 %v1102, %v1103
        %v1105 = vrot.slane %v1104, 2
        %v1106 = vadd.f32 %v1104, %v1105
        %v1107 = vrot.slane %v1106, 1
        %v1108 = vadd.f32 %v1106, %v1107
        %v1109 = vsel %vm296, %v1080, 0.0
        %v1110 = vsel %vm296, %v1081, 0.0
        %v1111 = vadd.f32 %v1109, %v1110
        %v1112 = vrot.slane %v1111, 4
        %v1113 = vadd.f32 %v1111, %v1112
        %v1114 = vrot.slane %v1113, 2
        %v1115 = vadd.f32 %v1113, %v1114
        %v1116 = vrot.slane %v1115, 1
        %v1117 = vadd.f32 %v1115, %v1116
        %vm1122 = vcmask 1041409
        %v1123 = vsel %vm1122, %v1099, %v1090
        %vm1124 = vcmask 1042434
        %v1125 = vsel %vm1124, %v1108, %v1123
        %vm1126 = vcmask 1043459
        %v1127 = vsel %vm1126, %v1117, %v1125
        %vm1129 = vcmask 125952
        %1130 = vst.msk [vmem:[%s287] sm:$0xf] %vm1129, %v1127
        %s1131 = sand.u32 %s143, 1
        %s1132 = scalar_lea.sflag [#allocation5], %s1131
        %s1133 = sand.u32 %s143, 1
        %s1134 = smul.addr %s1133, 4
        %s1135 = scalar_lea.vmem [#allocation11], %s1134
        // Predicated region
        $region57: #{tpu_custom_call.1} parent=39 // pred_check
          %p1136 = pneg %p153
        $region58: #{tpu_custom_call.1} parent=39 // pred_check_branch
          %1138 = sbr.rel (%p1136) target = $region60
        $region59: #{tpu_custom_call.1} parent=39 // pred_region
          %s1140 = ssub.s32 64, 64
          %1141 = vsyncadd %s1132, %s1140
          %s1142 = smul.addr %s25, 64
          %s1143 = scalar_lea.hbm %s5, %s1142
          %s1145 = sshll.u32 %s1135, 4
          %s1146 = int_to_ptr.vmem [resolvable:$true] %s1145
          %1148 = dma.vmem_to_hbm [thread:$0]  %s1146, 64, %s1143, %s1132
        $region60: #{tpu_custom_call.1} parent=39 // pred_fallthru
          _
      $region40: #{tpu_custom_call.1} parent=5 // pred_fallthru
        _
      %p1149 = scmp.le.s32.totalorder 2, %s20
      // Predicated region
      $region61: #{tpu_custom_call.1} parent=5 // pred_check
        %p1150 = pneg %p1149
      $region62: #{tpu_custom_call.1} parent=5 // pred_check_branch
        %1152 = sbr.rel (%p1150) target = $region64
      $region63: #{tpu_custom_call.1} parent=5 // pred_region
        %s1153 = ssub.s32 %s20, 2
        // Predicated region
        $region65: #{tpu_custom_call.1} parent=63 // pred_check
          %p1154 = pneg %p159
        $region66: #{tpu_custom_call.1} parent=63 // pred_check_branch
          %1156 = sbr.rel (%p1154) target = $region68
        $region67: #{tpu_custom_call.1} parent=63 // pred_region
          %s1157 = sand.u32 %s144, 1
          %s1158 = scalar_lea.sflag [#allocation5], %s1157
          %s1159 = sand.u32 %s144, 1
          %s1160 = smul.addr %s1159, 4
          %s1161 = scalar_lea.vmem [#allocation11], %s1160
          %1162 = dma.done %s1158, 64
        $region68: #{tpu_custom_call.1} parent=63 // pred_fallthru
          _
      $region64: #{tpu_custom_call.1} parent=5 // pred_fallthru
        _
    $region6: #{tpu_custom_call.1} parent=1 // loop_footer
      %s24 = sadd.s32 1, %s20
    $region7: #{tpu_custom_call.1} parent=1 // loop_footer_branch
      %19 = sbr.rel target = $region3
    $region8: #{tpu_custom_call.1} parent=1 // loop_exit
      _
    %1163 = vsyncpa [#allocation4], 1
    %s1164 = scalar_lea.sflag [#allocation4], 1
    %1165 = vsyncpa %s1164, 1
    %1166 = vsyncpa [#allocation7], 1
    %1167 = vsyncpa [#allocation10], 1
    %s1168 = scalar_lea.sflag [#allocation10], 1
    %1169 = vsyncpa %s1168, 1
    %1170 = vsyncpa [#allocation5], 1
    %s1171 = scalar_lea.sflag [#allocation5], 1
    %1172 = vsyncpa %s1171, 1

</llo_original>
